<compile_context>
chip_gen: v7x
topology: tpu7x:2x2x1
jax: 0.10.0
libtpu: 0.0.40
codegen_flags: <defaults>
</compile_context>

<pallas_src>
import numpy as np
import jax
import jax.numpy as jnp
from jax.experimental import pallas as pl
from jax.experimental.pallas import tpu as pltpu

LANE = 128
CHUNK_ROWS = 256          # 128 KiB f32 sub-chunk processed per inner-loop step
MAX_BLOCK_ROWS = 4096     # 2 MiB f32 per input stream per pipeline buffer
TARGET_GRID_STEPS = 8     # aim for >= 8 grid steps (v7x megacore balance)


def _round_up(x, m):
    return ((x + m - 1) // m) * m


def _cdiv(a, b):
    return -(-a // b)


def _make_wbce_kernel(has_negative, block_rows, chunk_rows, valid_rows):
    """Build the kernel body. All shape parameters are static per-compile."""
    n_chunks = block_rows // chunk_rows

    def _chunk_partials(x, t, nw, valid):
        x = x.astype(jnp.float32)
        t_pos = t.astype(jnp.float32) >= 0.5
        # Single transcendental per element: the thresholded target is exactly
        # 0/1 so only the selected BCE branch contributes.  PyTorch's
        # binary_cross_entropy clamps the log at -100.
        p_sel = jnp.where(t_pos, x, 1.0 - x)
        bce = -jnp.maximum(jnp.log(p_sel), -100.0)

        # valid is (chunk, 1); garbage rows of a partial last block may hold
        # NaN/Inf bit patterns, so mask with where (not multiply).
        pos_mask = jnp.logical_and(valid, t_pos)
        neg_mask = jnp.logical_and(valid, jnp.logical_not(t_pos))
        pos_cnt = jnp.where(pos_mask, 1.0, 0.0)            # -> num_label_pos
        pos_loss = jnp.where(pos_mask, bce, 0.0)            # -> sum(t * bce)
        if nw is not None:
            w = 1.0 + nw.astype(jnp.float32)
            neg_loss = jnp.where(neg_mask, w * bce, 0.0)    # -> sum((1-t)(1+neg)bce)
        else:
            neg_loss = jnp.where(neg_mask, bce, 0.0)

        def vred(v):
            # (chunk, 128) -> (chunk//8, 8, 128) -> sum over leading axis:
            # pure VPU vreg adds, no cross-lane (XLU) traffic, no SMEM RMW.
            return jnp.sum(v.reshape(chunk_rows // 8, 8, LANE), axis=0)

        return vred(pos_cnt), vred(pos_loss), vred(neg_loss)

    def body(x_ref, t_ref, nw_ref, out_ref):
        block_base = pl.program_id(0) * block_rows
        row_ids = jax.lax.broadcasted_iota(jnp.int32, (chunk_rows, 1), 0)

        if n_chunks == 1:
            valid = (block_base + row_ids) < valid_rows
            nw = nw_ref[...] if nw_ref is not None else None
            acc = _chunk_partials(x_ref[...], t_ref[...], nw, valid)
        else:
            def loop_body(c, carry):
                start = pl.multiple_of(c * chunk_rows, chunk_rows)
                x = x_ref[pl.ds(start, chunk_rows), :]
                t = t_ref[pl.ds(start, chunk_rows), :]
                nw = (nw_ref[pl.ds(start, chunk_rows), :]
                      if nw_ref is not None else None)
                valid = (block_base + start + row_ids) < valid_rows
                d = _chunk_partials(x, t, nw, valid)
                return tuple(a + b for a, b in zip(carry, d))

            zeros = jnp.zeros((8, LANE), jnp.float32)
            acc = jax.lax.fori_loop(0, n_chunks, loop_body,
                                    (zeros, zeros, zeros), unroll=2)

        out_ref[0, 0] = acc[0]
        out_ref[0, 1] = acc[1]
        out_ref[0, 2] = acc[2]

    if has_negative:
        def kernel(x_ref, t_ref, nw_ref, out_ref):
            body(x_ref, t_ref, nw_ref, out_ref)
    else:
        def kernel(x_ref, t_ref, out_ref):
            body(x_ref, t_ref, None, out_ref)
    return kernel


def weighted_bce_2d(inp, target, negative=None,
                    size_average=True, batch_average=True):
    """JAX/Pallas equivalent of WeightedBCE2d.forward (NCHW inputs)."""
    shape = inp.shape
    n = int(np.prod(shape))
    has_negative = negative is not None

    rows = _cdiv(n, LANE)                     # valid lane-dense rows

    # Block-row selection:
    #  * multiple of 32 (clean sublane tiling for f32 / bf16 / int8 streams)
    #  * multiple of CHUNK_ROWS when larger than one chunk (clean inner loop)
    #  * aim for >= TARGET_GRID_STEPS steps so both v7x TCs get work
    #  * cap at MAX_BLOCK_ROWS (2 MiB f32 per stream per buffer)
    if rows <= CHUNK_ROWS:
        # Tiny input: pad rows to a 32 multiple (negligible copy) so the single
        # block matches the array exactly; padded zero rows contribute 0 and
        # are additionally masked.
        rows_pad = _round_up(rows, 32)
        block_rows = rows_pad
    else:
        # Large input: never pad rows; partial last block is masked in-kernel.
        rows_pad = rows
        target_rows = _cdiv(rows, TARGET_GRID_STEPS)
        block_rows = min(MAX_BLOCK_ROWS,
                         max(CHUNK_ROWS, _round_up(target_rows, CHUNK_ROWS)))
    chunk_rows = min(CHUNK_ROWS, block_rows)
    grid0 = _cdiv(rows_pad, block_rows)
    n_pad = rows_pad * LANE

    def prep(a):
        # reshape of a contiguous array is free (no HBM copy).  Only the
        # sub-128 remainder is ever padded for large inputs (<=127 zeros),
        # never up to a block_rows multiple.  Zero-padded tail elements
        # contribute exactly 0 to every accumulated quantity.  Native dtype is
        # preserved (cast happens in-kernel), so narrow target/negative dtypes
        # directly cut HBM traffic.
        a = a.reshape(-1)
        if n_pad != n:
            a = jnp.pad(a, (0, n_pad - n))
        return a.reshape(rows_pad, LANE)

    args = [prep(inp), prep(target)]
    if has_negative:
        args.append(prep(negative))

    in_spec = pl.BlockSpec((block_rows, LANE), lambda i: (i, 0))
    out_spec = pl.BlockSpec((1, 3, 8, LANE), lambda i: (i, 0, 0, 0))

    partials = pl.pallas_call(
        _make_wbce_kernel(has_negative, block_rows, chunk_rows, rows),
        out_shape=jax.ShapeDtypeStruct((grid0, 3, 8, LANE), jnp.float32),
        grid_spec=pltpu.PrefetchScalarGridSpec(
            num_scalar_prefetch=0,
            grid=(grid0,),
            in_specs=[in_spec] * len(args),
            out_specs=out_spec,
        ),
        compiler_params=pltpu.CompilerParams(
            # Independent per-block partials -> v7x shards across both TCs.
            dimension_semantics=("parallel",),
            # 3 streams x <=2 MiB x 2 buffers + ~KB-scale loop temporaries.
            # Lifts v5e's 16 MiB default scoped limit; well inside v6e/v7x.
            vmem_limit_bytes=32 * 1024 * 1024,
        ),
    )(*args)

    sums = jnp.sum(partials, axis=(0, 2, 3))         # tiny: (3,)
    num_pos = sums[0]
    loss_pos = sums[1]
    loss_neg = sums[2]
    num_total = jnp.float32(n)                       # sum(t) + sum(1-t) == n
    num_neg = num_total - num_pos
    final = num_pos / num_total * loss_pos + num_neg / num_total * loss_neg

    if size_average:
        final = final / n
    elif batch_average:
        final = final / shape[0]
    return final


def _reference(inp, target, negative=None,
               size_average=True, batch_average=True):
    """Pure-JAX reference mirroring the PyTorch module."""
    if negative is None:
        negative = jnp.zeros_like(inp)
    t = (target >= 0.5).astype(jnp.float32)
    num_pos = jnp.sum(t)
    num_neg = jnp.sum(1.0 - t)
    num_total = num_pos + num_neg
    log_p = jnp.maximum(jnp.log(inp), -100.0)
    log_1mp = jnp.maximum(jnp.log(1.0 - inp), -100.0)
    bce = -(t * log_p + (1.0 - t) * log_1mp)
    loss_val = -bce
    loss_pos = jnp.sum(-t * loss_val)
    weight = (1.0 - t) * (1.0 + negative)
    loss_neg = jnp.sum(-weight * loss_val)
    final = num_pos / num_total * loss_pos + num_neg / num_total * loss_neg
    if size_average:
        final = final / np.prod(inp.shape)
    elif batch_average:
        final = final / inp.shape[0]
    return final


if __name__ == "__main__":
    key = jax.random.PRNGKey(0)
    k1, k2, k3 = jax.random.split(key, 3)

    B, C, H, W = 2, 4, 16, 16            # NCHW, same as the PyTorch module
    inp = jax.nn.sigmoid(jax.random.normal(k1, (B, C, H, W), jnp.float32))
    target = jax.random.uniform(k2, (B, C, H, W), jnp.float32)
    negative = jax.random.uniform(k3, (B, C, H, W), jnp.float32)

    # 3-input path (with negative weights)
    loss = jax.block_until_ready(weighted_bce_2d(inp, target, negative))
    ref = jax.block_until_ready(_reference(inp, target, negative))
    assert np.isfinite(float(loss)), "non-finite loss"
    np.testing.assert_allclose(float(loss), float(ref), rtol=1e-5, atol=1e-6)

    # 2-input path (negative=None): no zeros stream is built or streamed
    loss0 = jax.block_until_ready(weighted_bce_2d(inp, target, None))
    ref0 = jax.block_until_ready(_reference(inp, target, None))
    np.testing.assert_allclose(float(loss0), float(ref0), rtol=1e-5, atol=1e-6)

    # Ragged shape: exercises the sub-128 zero pad + masked garbage tail rows
    k4, k5, k6 = jax.random.split(jax.random.PRNGKey(1), 3)
    shp = (2, 3, 15, 17)
    inp_r = jax.nn.sigmoid(jax.random.normal(k4, shp, jnp.float32))
    tgt_r = jax.random.uniform(k5, shp, jnp.float32)
    neg_r = jax.random.uniform(k6, shp, jnp.float32)
    loss_r = jax.block_until_ready(weighted_bce_2d(inp_r, tgt_r, neg_r))
    ref_r = jax.block_until_ready(_reference(inp_r, tgt_r, neg_r))
    np.testing.assert_allclose(float(loss_r), float(ref_r), rtol=1e-5, atol=1e-6)

    # Medium shape: multi-step grid, partial last block, inner fori_loop path
    k7, k8, k9 = jax.random.split(jax.random.PRNGKey(2), 3)
    shp_m = (2, 4, 192, 192)
    inp_m = jax.nn.sigmoid(jax.random.normal(k7, shp_m, jnp.float32))
    tgt_m = jax.random.uniform(k8, shp_m, jnp.float32)
    neg_m = jax.random.uniform(k9, shp_m, jnp.float32)
    loss_m = jax.block_until_ready(weighted_bce_2d(inp_m, tgt_m, neg_m))
    ref_m = jax.block_until_ready(_reference(inp_m, tgt_m, neg_m))
    np.testing.assert_allclose(float(loss_m), float(ref_m), rtol=1e-4, atol=1e-6)

    print("KERNEL_OK")
</pallas_src>

<mosaic_0001>
module attributes {stable_mosaic.version = 11 : i64} {
  func.func @kernel(%arg0: i32, %arg1: memref<32x128xf32, #tpu.memory_space<vmem>>, %arg2: memref<32x128xf32, #tpu.memory_space<vmem>>, %arg3: memref<32x128xf32, #tpu.memory_space<vmem>>, %arg4: memref<1x3x8x128xf32, #tpu.memory_space<vmem>>) attributes {dimension_semantics = [#tpu.dimension_semantics<parallel>], iteration_bounds = array<i64: 1>, scalar_prefetch = 0 : i64, scratch_operands = 0 : i64, tpu.core_type = #tpu.core_type<tc>, window_params = [{transform_indices = @transform_0, window_bounds = array<i64: 32, 128>}, {transform_indices = @transform_1, window_bounds = array<i64: 32, 128>}, {transform_indices = @transform_2, window_bounds = array<i64: 32, 128>}, {transform_indices = @transform_3, window_bounds = array<i64: 1, 3, 8, 128>}]} {
    %c32_i32 = arith.constant 32 : i32
    %0 = arith.muli %arg0, %c32_i32 : i32
    %1 = tpu.iota {dimensions = array<i32: 0>} : vector<32x1xi32>
    %2 = vector.broadcast %0 : i32 to vector<32x1xi32>
    %3 = arith.addi %2, %1 : vector<32x1xi32>
    %c16_i32 = arith.constant 16 : i32
    %4 = vector.broadcast %c16_i32 : i32 to vector<32x1xi32>
    %5 = arith.cmpi slt, %3, %4 : vector<32x1xi32>
    %c0 = arith.constant 0 : index
    %c0_0 = arith.constant 0 : index
    %6 = vector.load %arg3[%c0, %c0_0] : memref<32x128xf32, #tpu.memory_space<vmem>>, vector<32x128xf32>
    %c0_1 = arith.constant 0 : index
    %c0_2 = arith.constant 0 : index
    %7 = vector.load %arg1[%c0_1, %c0_2] : memref<32x128xf32, #tpu.memory_space<vmem>>, vector<32x128xf32>
    %c0_3 = arith.constant 0 : index
    %c0_4 = arith.constant 0 : index
    %8 = vector.load %arg2[%c0_3, %c0_4] : memref<32x128xf32, #tpu.memory_space<vmem>>, vector<32x128xf32>
    %cst = arith.constant 5.000000e-01 : f32
    %9 = vector.broadcast %cst : f32 to vector<32x128xf32>
    %10 = arith.cmpf oge, %8, %9 : vector<32x128xf32>
    %cst_5 = arith.constant 1.000000e+00 : f32
    %11 = vector.broadcast %cst_5 : f32 to vector<32x128xf32>
    %12 = arith.subf %11, %7 : vector<32x128xf32>
    %13 = arith.select %10, %7, %12 : vector<32x128xi1>, vector<32x128xf32>
    %14 = math.log %13 : vector<32x128xf32>
    %cst_6 = arith.constant -1.000000e+02 : f32
    %15 = vector.broadcast %cst_6 : f32 to vector<32x128xf32>
    %16 = arith.maximumf %14, %15 : vector<32x128xf32>
    %cst_7 = arith.constant 0.000000e+00 : f32
    %17 = vector.broadcast %cst_7 : f32 to vector<32x128xf32>
    %18 = arith.subf %17, %16 : vector<32x128xf32>
    %19 = vector.broadcast %5 : vector<32x1xi1> to vector<32x128xi1>
    %20 = arith.andi %19, %10 : vector<32x128xi1>
    %cst_8 = arith.constant dense<true> : vector<32x128xi1>
    %21 = arith.xori %10, %cst_8 : vector<32x128xi1>
    %22 = vector.broadcast %5 : vector<32x1xi1> to vector<32x128xi1>
    %23 = arith.andi %22, %21 : vector<32x128xi1>
    %cst_9 = arith.constant 1.000000e+00 : f32
    %cst_10 = arith.constant 0.000000e+00 : f32
    %24 = vector.broadcast %cst_9 : f32 to vector<32x128xf32>
    %25 = vector.broadcast %cst_10 : f32 to vector<32x128xf32>
    %26 = arith.select %20, %24, %25 : vector<32x128xi1>, vector<32x128xf32>
    %cst_11 = arith.constant 0.000000e+00 : f32
    %27 = vector.broadcast %cst_11 : f32 to vector<32x128xf32>
    %28 = arith.select %20, %18, %27 : vector<32x128xi1>, vector<32x128xf32>
    %cst_12 = arith.constant 1.000000e+00 : f32
    %29 = vector.broadcast %cst_12 : f32 to vector<32x128xf32>
    %30 = arith.addf %29, %6 : vector<32x128xf32>
    %31 = arith.mulf %30, %18 : vector<32x128xf32>
    %cst_13 = arith.constant 0.000000e+00 : f32
    %32 = vector.broadcast %cst_13 : f32 to vector<32x128xf32>
    %33 = arith.select %23, %31, %32 : vector<32x128xi1>, vector<32x128xf32>
    %34 = vector.shape_cast %26 : vector<32x128xf32> to vector<4x8x128xf32>
    %cst_14 = arith.constant dense<0.000000e+00> : vector<8x128xf32>
    %35 = vector.multi_reduction <add>, %34, %cst_14 [0] : vector<4x8x128xf32> to vector<8x128xf32>
    %36 = vector.shape_cast %28 : vector<32x128xf32> to vector<4x8x128xf32>
    %cst_15 = arith.constant dense<0.000000e+00> : vector<8x128xf32>
    %37 = vector.multi_reduction <add>, %36, %cst_15 [0] : vector<4x8x128xf32> to vector<8x128xf32>
    %38 = vector.shape_cast %33 : vector<32x128xf32> to vector<4x8x128xf32>
    %cst_16 = arith.constant dense<0.000000e+00> : vector<8x128xf32>
    %39 = vector.multi_reduction <add>, %38, %cst_16 [0] : vector<4x8x128xf32> to vector<8x128xf32>
    %c0_17 = arith.constant 0 : index
    %c0_18 = arith.constant 0 : index
    %c0_19 = arith.constant 0 : index
    %c0_20 = arith.constant 0 : index
    %40 = vector.load %arg4[%c0_17, %c0_18, %c0_19, %c0_20] : memref<1x3x8x128xf32, #tpu.memory_space<vmem>>, vector<1x1x8x128xf32>
    %41 = vector.shape_cast %40 : vector<1x1x8x128xf32> to vector<8x128xf32>
    %42 = vector.shape_cast %35 : vector<8x128xf32> to vector<1x1x8x128xf32>
    tpu.vector_store %arg4[%c0_17, %c0_18, %c0_19, %c0_20], %42 {strides = array<i32>} : memref<1x3x8x128xf32, #tpu.memory_space<vmem>>, vector<1x1x8x128xf32>,
    %c0_21 = arith.constant 0 : index
    %c1 = arith.constant 1 : index
    %c0_22 = arith.constant 0 : index
    %c0_23 = arith.constant 0 : index
    %43 = vector.load %arg4[%c0_21, %c1, %c0_22, %c0_23] : memref<1x3x8x128xf32, #tpu.memory_space<vmem>>, vector<1x1x8x128xf32>
    %44 = vector.shape_cast %43 : vector<1x1x8x128xf32> to vector<8x128xf32>
    %45 = vector.shape_cast %37 : vector<8x128xf32> to vector<1x1x8x128xf32>
    tpu.vector_store %arg4[%c0_21, %c1, %c0_22, %c0_23], %45 {strides = array<i32>} : memref<1x3x8x128xf32, #tpu.memory_space<vmem>>, vector<1x1x8x128xf32>,
    %c0_24 = arith.constant 0 : index
    %c2 = arith.constant 2 : index
    %c0_25 = arith.constant 0 : index
    %c0_26 = arith.constant 0 : index
    %46 = vector.load %arg4[%c0_24, %c2, %c0_25, %c0_26] : memref<1x3x8x128xf32, #tpu.memory_space<vmem>>, vector<1x1x8x128xf32>
    %47 = vector.shape_cast %46 : vector<1x1x8x128xf32> to vector<8x128xf32>
    %48 = vector.shape_cast %39 : vector<8x128xf32> to vector<1x1x8x128xf32>
    tpu.vector_store %arg4[%c0_24, %c2, %c0_25, %c0_26], %48 {strides = array<i32>} : memref<1x3x8x128xf32, #tpu.memory_space<vmem>>, vector<1x1x8x128xf32>,
    return
  }
  func.func @transform_0(%arg0: i32) -> (i32, i32) {
    %c0_i32 = arith.constant 0 : i32
    %c0_i32_0 = arith.constant 0 : i32
    return %arg0, %c0_i32 : i32, i32
  }
  func.func @transform_1(%arg0: i32) -> (i32, i32) {
    %c0_i32 = arith.constant 0 : i32
    %c0_i32_0 = arith.constant 0 : i32
    return %arg0, %c0_i32 : i32, i32
  }
  func.func @transform_2(%arg0: i32) -> (i32, i32) {
    %c0_i32 = arith.constant 0 : i32
    %c0_i32_0 = arith.constant 0 : i32
    return %arg0, %c0_i32 : i32, i32
  }
  func.func @transform_3(%arg0: i32) -> (i32, i32, i32, i32) {
    %c0_i32 = arith.constant 0 : i32
    %c0_i32_0 = arith.constant 0 : i32
    %c0_i32_1 = arith.constant 0 : i32
    %c0_i32_2 = arith.constant 0 : i32
    return %arg0, %c0_i32, %c0_i32_0, %c0_i32_1 : i32, i32, i32, i32
  }
}

</mosaic_0001>

<llo_original>
// kernel: tpu_custom_call.1
$region0: #{tpu_custom_call.1}
  #allocation0 [shape = 'u32[]', space=smem, size = 0x4, offset = 0x4, fixed_abs, tag = 'smem constant byte address 0x4 - core index']
  #allocation1 [shape = 'u32[144,128]{1,0:T(1,128)}', space=vmem, size = 0x12000, scoped, tag = 'internal scratch']
  %s0 = inlined_call_operand.hbm [shape: f32[32,128], index: 0, kind: input, shape index: {}]
  %s1 = inlined_call_operand.hbm [shape: f32[32,128], index: 1, kind: input, shape index: {}]
  %s2 = inlined_call_operand.hbm [shape: f32[32,128], index: 2, kind: input, shape index: {}]
  %s3 = inlined_call_operand.hbm [shape: f32[1,3,8,128], index: 3, kind: output, shape index: {}]
  %s4 = sld [smem:[#allocation0]]
  $region34: #{tpu_custom_call.1} parent=0
    _
  %s6 = ssub.s32 1, %s4
  %s7 = scalar_select 0, %s6, %s4
  $region1: #{tpu_custom_call.1} parent=0
    #allocation2 [shape = 'u8[16384]{0}', space=vmem, size = 0x4000, scoped, tag = 'input window, operand 0, single buffered']
    #allocation3 [shape = 's32[1]{0}', space=sflag, size = 0x4, scoped, tag = 'scoped memory for tpu_custom_call.1']
    #allocation4 [shape = 's32[1]{0}', space=sflag, size = 0x4, scoped, tag = 'scoped memory for tpu_custom_call.1']
    #allocation5 [shape = 'u8[16384]{0}', space=vmem, size = 0x4000, scoped, tag = 'input window, operand 1, single buffered']
    #allocation6 [shape = 's32[1]{0}', space=sflag, size = 0x4, scoped, tag = 'scoped memory for tpu_custom_call.1']
    #allocation7 [shape = 'u8[16384]{0}', space=vmem, size = 0x4000, scoped, tag = 'input window, operand 2, single buffered']
    #allocation8 [shape = 'u8[12288]{0}', space=vmem, size = 0x3000, scoped, tag = 'output window, operand 0, single buffered']
    %8 = vsyncpa [#allocation3], 0
    %9 = vsyncpa [#allocation6], 0
    %10 = vsyncpa [#allocation4], 0
    // Predicated region
    $region2: #{tpu_custom_call.1} parent=1 // pred_check
      _
    $region3: #{tpu_custom_call.1} parent=1 // pred_check_branch
      %12 = sbr.rel (0) target = $region5
    $region4: #{tpu_custom_call.1} parent=1 // pred_region
      %s14 = ssub.s32 512, 512
      %15 = vsyncadd [#allocation3], %s14
      %s16 = sshll.u32 [#allocation2], 4
      %s17 = int_to_ptr.vmem [resolvable:$true] %s16
      %22 = dma.hbm_to_vmem [thread:$0]  %s0, 512, %s17, [#allocation3], 128, 128, 8
    $region5: #{tpu_custom_call.1} parent=1 // pred_fallthru
      _
    // Predicated region
    $region6: #{tpu_custom_call.1} parent=1 // pred_check
      _
    $region7: #{tpu_custom_call.1} parent=1 // pred_check_branch
      %24 = sbr.rel (0) target = $region9
    $region8: #{tpu_custom_call.1} parent=1 // pred_region
      %s26 = ssub.s32 512, 512
      %27 = vsyncadd [#allocation6], %s26
      %s28 = sshll.u32 [#allocation5], 4
      %s29 = int_to_ptr.vmem [resolvable:$true] %s28
      %34 = dma.hbm_to_vmem [thread:$0]  %s1, 512, %s29, [#allocation6], 128, 128, 8
    $region9: #{tpu_custom_call.1} parent=1 // pred_fallthru
      _
    // Predicated region
    $region10: #{tpu_custom_call.1} parent=1 // pred_check
      _
    $region11: #{tpu_custom_call.1} parent=1 // pred_check_branch
      %36 = sbr.rel (0) target = $region13
    $region12: #{tpu_custom_call.1} parent=1 // pred_region
      %s38 = ssub.s32 512, 512
      %39 = vsyncadd [#allocation6], %s38
      %s40 = sshll.u32 [#allocation7], 4
      %s41 = int_to_ptr.vmem [resolvable:$true] %s40
      %46 = dma.hbm_to_vmem [thread:$0]  %s2, 512, %s41, [#allocation6], 128, 128, 8
    $region13: #{tpu_custom_call.1} parent=1 // pred_fallthru
      _
    // Predicated region
    $region14: #{tpu_custom_call.1} parent=1 // pred_check
      _
    $region15: #{tpu_custom_call.1} parent=1 // pred_check_branch
      %48 = sbr.rel (0) target = $region17
    $region16: #{tpu_custom_call.1} parent=1 // pred_region
      %49 = dma.done [#allocation3], 512
    $region17: #{tpu_custom_call.1} parent=1 // pred_fallthru
      _
    // Predicated region
    $region18: #{tpu_custom_call.1} parent=1 // pred_check
      _
    $region19: #{tpu_custom_call.1} parent=1 // pred_check_branch
      %51 = sbr.rel (0) target = $region21
    $region20: #{tpu_custom_call.1} parent=1 // pred_region
      %52 = dma.done [#allocation6], 512
    $region21: #{tpu_custom_call.1} parent=1 // pred_fallthru
      _
    // Predicated region
    $region22: #{tpu_custom_call.1} parent=1 // pred_check
      _
    $region23: #{tpu_custom_call.1} parent=1 // pred_check_branch
      %54 = sbr.rel (0) target = $region25
    $region24: #{tpu_custom_call.1} parent=1 // pred_region
      %55 = dma.done [#allocation6], 512
    $region25: #{tpu_custom_call.1} parent=1 // pred_fallthru
      _
    %s56 = smul.u32 0, 32
    %v57 = vlaneseq
    %v58 = vshrl.u32 %v57, 7
    %v59 = vadd.s32 %v58, 8
    %v60 = vadd.s32 %v58, 16
    %v61 = vadd.s32 %v58, 24
    %v62 = vstv %s56
    %v63 = vadd.s32 %v62, %v58
    %v64 = vadd.s32 %v62, %v59
    %v65 = vadd.s32 %v62, %v60
    %v66 = vadd.s32 %v62, %v61
    %vm67 = vcmp.lt.s32.totalorder %v63, 16
    %vm68 = vcmp.lt.s32.totalorder %v64, 16
    %vm69 = vcmp.lt.s32.totalorder %v65, 16
    %vm70 = vcmp.lt.s32.totalorder %v66, 16
    %v71 = vld [vmem:[#allocation7] sm:$0xff]
    %v72 = vld [vmem:[#allocation7 + $0x8] sm:$0xff]
    %v73 = vld [vmem:[#allocation7 + $0x10] sm:$0xff]
    %v74 = vld [vmem:[#allocation7 + $0x18] sm:$0xff]
    %v75 = vld [vmem:[#allocation2] sm:$0xff]
    %v76 = vld [vmem:[#allocation2 + $0x8] sm:$0xff]
    %v77 = vld [vmem:[#allocation2 + $0x10] sm:$0xff]
    %v78 = vld [vmem:[#allocation2 + $0x18] sm:$0xff]
    %v79 = vld [vmem:[#allocation5] sm:$0xff]
    %v80 = vld [vmem:[#allocation5 + $0x8] sm:$0xff]
    %v81 = vld [vmem:[#allocation5 + $0x10] sm:$0xff]
    %v82 = vld [vmem:[#allocation5 + $0x18] sm:$0xff]
    %vm83 = vcmp.ge.f32.partialorder %v79, 0.5
    %vm84 = vcmp.ge.f32.partialorder %v80, 0.5
    %vm85 = vcmp.ge.f32.partialorder %v81, 0.5
    %vm86 = vcmp.ge.f32.partialorder %v82, 0.5
    %v87 = vsub.f32 1.0, %v75
    %v88 = vsub.f32 1.0, %v76
    %v89 = vsub.f32 1.0, %v77
    %v90 = vsub.f32 1.0, %v78
    %v91 = vsel %vm83, %v75, %v87
    %v92 = vsel %vm84, %v76, %v88
    %v93 = vsel %vm85, %v77, %v89
    %v94 = vsel %vm86, %v78, %v90
    %v95 = vlog2.pop %v91
    %v96 = vmul.f32 %v95, 0.6931472
    %v97 = vlog2.pop %v92
    %v98 = vmul.f32 %v97, 0.6931472
    %v99 = vlog2.pop %v93
    %v100 = vmul.f32 %v99, 0.6931472
    %v101 = vlog2.pop %v94
    %v102 = vmul.f32 %v101, 0.6931472
    %v103 = vmax.f32 %v96, -100.0
    %v104 = vmax.f32 %v98, -100.0
    %v105 = vmax.f32 %v100, -100.0
    %v106 = vmax.f32 %v102, -100.0
    %v107 = vsub.f32 0.0, %v103
    %v108 = vsub.f32 0.0, %v104
    %v109 = vsub.f32 0.0, %v105
    %v110 = vsub.f32 0.0, %v106
    %v111 = vsel %vm67, 1, 0
    %v112 = vsel %vm68, 1, 0
    %v113 = vsel %vm69, 1, 0
    %v114 = vsel %vm70, 1, 0
    %vm115 = vcmp.eq.s32.totalorder %v111, 1
    %vm116 = vcmp.eq.s32.totalorder %v112, 1
    %vm117 = vcmp.eq.s32.totalorder %v113, 1
    %vm118 = vcmp.eq.s32.totalorder %v114, 1
    %vm119 = vmand %vm115, %vm83
    %vm120 = vmand %vm116, %vm84
    %vm121 = vmand %vm117, %vm85
    %vm122 = vmand %vm118, %vm86
    %vm123 = vmxor %vm83, 1
    %vm124 = vmxor %vm84, 1
    %vm125 = vmxor %vm85, 1
    %vm126 = vmxor %vm86, 1
    %vm127 = vmand %vm115, %vm123
    %vm128 = vmand %vm116, %vm124
    %vm129 = vmand %vm117, %vm125
    %vm130 = vmand %vm118, %vm126
    %v131 = vsel %vm119, 1.0, 0.0
    %v132 = vsel %vm120, 1.0, 0.0
    %v133 = vsel %vm121, 1.0, 0.0
    %v134 = vsel %vm122, 1.0, 0.0
    %v135 = vsel %vm119, %v107, 0.0
    %v136 = vsel %vm120, %v108, 0.0
    %v137 = vsel %vm121, %v109, 0.0
    %v138 = vsel %vm122, %v110, 0.0
    %v139 = vadd.f32 %v71, 1.0
    %v140 = vadd.f32 %v72, 1.0
    %v141 = vadd.f32 %v73, 1.0
    %v142 = vadd.f32 %v74, 1.0
    %v143 = vmul.f32 %v139, %v107
    %v144 = vmul.f32 %v140, %v108
    %v145 = vmul.f32 %v141, %v109
    %v146 = vmul.f32 %v142, %v110
    %v147 = vsel %vm127, %v143, 0.0
    %v148 = vsel %vm128, %v144, 0.0
    %v149 = vsel %vm129, %v145, 0.0
    %v150 = vsel %vm130, %v146, 0.0
    %v151 = vadd.f32 %v131, %v132
    %v152 = vadd.f32 %v151, %v133
    %v153 = vadd.f32 %v152, %v134
    %v154 = vadd.f32 %v135, %v136
    %v155 = vadd.f32 %v154, %v137
    %v156 = vadd.f32 %v155, %v138
    %v157 = vadd.f32 %v147, %v148
    %v158 = vadd.f32 %v157, %v149
    %v159 = vadd.f32 %v158, %v150
    %160 = vst [vmem:[#allocation8] sm:$0xff] %v153
    %s161 = scalar_lea.vmem [#allocation8], 8
    %162 = vst [vmem:[%s161] sm:$0xff] %v156
    %s163 = scalar_lea.vmem [#allocation8], 16
    %164 = vst [vmem:[%s163] sm:$0xff] %v159
    // Predicated region
    $region26: #{tpu_custom_call.1} parent=1 // pred_check
      _
    $region27: #{tpu_custom_call.1} parent=1 // pred_check_branch
      %166 = sbr.rel (0) target = $region29
    $region28: #{tpu_custom_call.1} parent=1 // pred_region
      %s168 = ssub.s32 384, 384
      %169 = vsyncadd [#allocation4], %s168
      %s170 = sshll.u32 [#allocation8], 4
      %s171 = int_to_ptr.vmem [resolvable:$true] %s170
      %176 = dma.vmem_to_hbm [thread:$0]  %s171, 384, %s3, [#allocation4], 128, 128, 8
    $region29: #{tpu_custom_call.1} parent=1 // pred_fallthru
      _
    // Predicated region
    $region30: #{tpu_custom_call.1} parent=1 // pred_check
      _
    $region31: #{tpu_custom_call.1} parent=1 // pred_check_branch
      %178 = sbr.rel (0) target = $region33
    $region32: #{tpu_custom_call.1} parent=1 // pred_region
      %179 = dma.done [#allocation4], 384
    $region33: #{tpu_custom_call.1} parent=1 // pred_fallthru
      _
    %180 = vsyncpa [#allocation3], 1
    %181 = vsyncpa [#allocation6], 1
    %182 = vsyncpa [#allocation4], 1

</llo_original>
